<compile_context>
chip_gen: v7x
topology: tpu7x:2x2x1
jax: 0.10.0
libtpu: 0.0.40
codegen_flags: <defaults>
</compile_context>

<pallas_src>
import functools

import jax
import jax.numpy as jnp
from jax import lax
from jax.experimental import pallas as pl
from jax.experimental.pallas import tpu as pltpu


def _repadapter_kernel(x_ref, wa_ref, ba_ref, wc_ref, bc_ref, o_ref, *, fp32_tail):
    # x_ref:  (TN, C) activation tile (I/O dtype)
    # wa_ref: (H, C)  conv_A weight, lane-dense in C   ba_ref: (1, H) f32 bias
    # wc_ref: (H, C)  pre-combined conv_B/D weight     bc_ref: (1, C) f32 bias
    x = x_ref[...]

    # conv_A (1x1 Conv1d == per-token matmul over channels), f32 accumulate.
    # Contract x's C (axis 1) with wa's C (axis 1): (TN, C) x (H, C) -> (TN, H).
    # TODO(synk): training-mode dropout(p=0.1) not implemented (inference: identity).
    h = lax.dot_general(x, wa_ref[...],
                        dimension_numbers=(((1,), (1,)), ((), ())),
                        preferred_element_type=jnp.float32) + ba_ref[...]     # (TN, H)

    # Pre-combined second stage: scale*(w0*conv_B + w1*conv_D) folded into wc/bc.
    y = jnp.dot(h.astype(wc_ref.dtype), wc_ref[...],
                preferred_element_type=jnp.float32) + bc_ref[...]             # (TN, C)

    if fp32_tail:
        # fp32 residual path (f32 I/O, or forced on v5e which has no bf16 VALU).
        o_ref[...] = (y + x.astype(jnp.float32)).astype(o_ref.dtype)
    else:
        # Trimmed tail: downcast y once, residual add in the (bf16) I/O dtype.
        o_ref[...] = y.astype(o_ref.dtype) + x


def _pipeline_footprint_bytes(tn, C, H, x_itemsize):
    """Rough VMEM footprint of one pipeline stage set for tile rows = tn."""
    io_tiles = 2 * 2 * tn * C * x_itemsize            # x in + out, double-buffered
    weights = 2 * 2 * H * C * x_itemsize              # wa + per-batch wc, double-buffered
    biases = 2 * (H + C) * 4 * 2
    tmp = tn * C * 4 + tn * 128 * 4 + tn * 128 * x_itemsize   # f32 y, f32 h, cast h
    return io_tiles + weights + biases + tmp


def repadapter_router(x, params, *, scale=1.0, t=10.0, weights=None,
                      tn=512, vmem_budget_bytes=32 * 1024 * 1024,
                      vmem_limit_bytes=None, fp32_tail=None,
                      alias_input=False, x_buffer_count=2):
    B, N, C = x.shape
    wa, ba, wb, bb, wd, bd, we, be = params
    H = wa.shape[1]
    x_itemsize = jnp.dtype(x.dtype).itemsize

    # --- router (hoisted out of the kernel) -------------------------------
    if weights is None:
        logits = (x[:, 0, :].astype(jnp.float32) @ we.astype(jnp.float32)
                  + be.reshape(1, 2).astype(jnp.float32)) / t
        weights = jax.nn.softmax(logits, axis=-1)                         # (B, 2)
    weights = weights.astype(jnp.float32)

    # --- pre-combine per-batch second-stage weights / biases --------------
    w0 = weights[:, 0][:, None, None]
    w1 = weights[:, 1][:, None, None]
    w_comb = scale * (w0 * wb[None].astype(jnp.float32)
                      + w1 * wd[None].astype(jnp.float32))                # (B, H, C)
    b_comb = scale * (weights[:, 0:1] * bb.reshape(1, C).astype(jnp.float32)
                      + weights[:, 1:2] * bd.reshape(1, C).astype(jnp.float32))
    b_comb = b_comb.reshape(B, 1, C)                                      # (B, 1, C)

    # Lane-dense conv_A weight: (H, C) so the big C axis sits on the 128 lanes.
    wa_k = wa.T.astype(x.dtype)                                           # (H, C)
    wc_k = w_comb.astype(x.dtype)                                         # (B, H, C)
    ba_k = ba.reshape(1, H).astype(jnp.float32)
    bc_k = b_comb.astype(jnp.float32)

    # --- tiling ------------------------------------------------------------
    # Round user tn to a multiple of 8 (the (8,128) BlockSpec rule).
    tn = max(8, (tn // 8) * 8)
    TN = N if N <= tn else tn

    # Shrink TN until the double-buffered pipeline fits the VMEM budget
    # (conservative across v5e/v6e/v7x; v7x only has 64 MiB physical VMEM).
    while TN > 8 and _pipeline_footprint_bytes(TN, C, H, x_itemsize) > vmem_budget_bytes:
        TN = max(8, ((TN // 2) // 8) * 8)

    # Guarantee enough grid points to feed v7x's 2 TensorCores.
    min_grid_points = 4
    while TN > 8 and B * pl.cdiv(N, TN) < min_grid_points:
        TN = max(8, ((TN // 2) // 8) * 8)

    grid = (B, pl.cdiv(N, TN))

    # Explicit VMEM limit: above the computed footprint, under v7x's 64 MiB.
    if vmem_limit_bytes is None:
        fp = _pipeline_footprint_bytes(TN, C, H, x_itemsize)
        vmem_limit_bytes = int(min(max(int(fp * 1.5), 16 * 1024 * 1024),
                                   48 * 1024 * 1024))

    if fp32_tail is None:
        # f32 I/O -> fp32 tail is free; bf16/f16 I/O -> do the residual add in
        # the I/O dtype (set fp32_tail=True explicitly when targeting v5e).
        fp32_tail = (jnp.dtype(x.dtype) == jnp.dtype(jnp.float32))

    kernel = functools.partial(_repadapter_kernel, fp32_tail=fp32_tail)

    cost = pl.CostEstimate(
        flops=4 * B * N * C * H,                  # two (N,*)@(*,*) matmuls
        transcendentals=0,
        bytes_accessed=(2 * B * N * C * x_itemsize
                        + wa_k.size * jnp.dtype(wa_k.dtype).itemsize
                        + wc_k.size * jnp.dtype(wc_k.dtype).itemsize
                        + (ba_k.size + bc_k.size) * 4))

    x_spec_kwargs = {}
    if x_buffer_count > 2:
        x_spec_kwargs["pipeline_mode"] = pl.Buffered(x_buffer_count)

    return pl.pallas_call(
        kernel,
        out_shape=jax.ShapeDtypeStruct((B, N, C), x.dtype),
        grid_spec=pltpu.PrefetchScalarGridSpec(
            num_scalar_prefetch=0,
            grid=grid,
            in_specs=[
                pl.BlockSpec((pl.Squeezed(), TN, C), lambda b, n: (b, n, 0),
                             **x_spec_kwargs),                                  # x
                pl.BlockSpec((H, C), lambda b, n: (0, 0)),                      # Wa (H,C)
                pl.BlockSpec((1, H), lambda b, n: (0, 0)),                      # ba
                pl.BlockSpec((pl.Squeezed(), H, C), lambda b, n: (b, 0, 0)),    # w_comb[b]
                pl.BlockSpec((pl.Squeezed(), 1, C), lambda b, n: (b, 0, 0)),    # b_comb[b]
            ],
            out_specs=pl.BlockSpec((pl.Squeezed(), TN, C), lambda b, n: (b, n, 0)),
        ),
        compiler_params=pltpu.CompilerParams(
            dimension_semantics=("parallel", "parallel"),
            vmem_limit_bytes=vmem_limit_bytes),
        cost_estimate=cost,
        input_output_aliases=({0: 0} if alias_input else {}),
    )(x, wa_k, ba_k, wc_k, bc_k)


def init_params(key, C, H, groups):
    """Deterministic synthetic parameters.

    Shapes follow the module's __init__.  NOTE: the module zero-inits conv_B /
    conv_D (which would make the adapter a no-op); we use small deterministic
    random values instead so the kernel's compute is actually exercised.
    """
    kA, kB, kD, kE, kbe, kbb, kbd = jax.random.split(key, 7)

    # conv_A: torch weight (H, C, 1), xavier_uniform; stored transposed (C, H).
    limA = (6.0 / (C + H)) ** 0.5
    wa = jax.random.uniform(kA, (C, H), jnp.float32, -limA, limA)
    ba = jnp.zeros((1, H), jnp.float32)

    # conv_B / conv_D: torch weight (C, H//groups, 1), grouped -> block-diag (H, C).
    def grouped(k):
        wg = jax.random.normal(k, (groups, H // groups, C // groups), jnp.float32) * 0.02
        return jax.scipy.linalg.block_diag(*[wg[g] for g in range(groups)])  # (H, C)

    wb = grouped(kB)
    wd = grouped(kD)
    bb = jax.random.normal(kbb, (1, C), jnp.float32) * 0.02
    bd = jax.random.normal(kbd, (1, C), jnp.float32) * 0.02

    # expert_weights: nn.Linear(C, 2); stored as weight.T -> (C, 2), bias (1, 2).
    limE = (6.0 / (C + 2)) ** 0.5
    we = jax.random.uniform(kE, (C, 2), jnp.float32, -limE, limE)
    be = jax.random.normal(kbe, (1, 2), jnp.float32) * 0.1

    return (wa, ba, wb, bb, wd, bd, we, be)


def reference(x, params, scale, t):
    """Pure-JAX reference mirroring the PyTorch forward (inference, fp32)."""
    wa, ba, wb, bb, wd, bd, we, be = params
    logits = (x[:, 0, :] @ we + be) / t                   # (B, 2)
    w = jax.nn.softmax(logits, axis=-1)
    h = x @ wa + ba                                       # (B, N, H)
    yb = h @ wb + bb                                      # (B, N, C)
    yd = h @ wd + bd                                      # (B, N, C)
    return yb * scale * w[:, 0, None, None] + yd * scale * w[:, 1, None, None] + x


if __name__ == "__main__":
    B, N, C, H, groups = 2, 16, 32, 8, 2     # batch, seq, in_features, hidden_dim
    scale, t = 1.0, 10.0

    key = jax.random.PRNGKey(0)
    kx, kp = jax.random.split(key)
    x = jax.random.normal(kx, (B, N, C), jnp.float32)
    params = init_params(kp, C, H, groups)

    # Auto-tiling shrinks TN to 8 here (grid = (2, 2)) so the N-tiling path and
    # the dual-TC grid heuristic are both exercised at toy shapes; production
    # calls keep the 512-row default where the footprint allows.
    out = repadapter_router(x, params, scale=scale, t=t)
    out = jax.block_until_ready(out)

    ref = reference(x, params, scale, t)
    max_err = float(jnp.max(jnp.abs(out - ref)))
    assert jnp.allclose(out, ref, atol=1e-4, rtol=1e-4), f"max_err={max_err}"
    print("KERNEL_OK")
</pallas_src>

<mosaic_0001>
module attributes {stable_mosaic.version = 11 : i64} {
  func.func @_repadapter_kernel(%arg0: i32, %arg1: i32, %arg2: memref<1x8x32xf32, #tpu.memory_space<vmem>>, %arg3: memref<8x32xf32, #tpu.memory_space<vmem>>, %arg4: memref<1x8xf32, #tpu.memory_space<vmem>>, %arg5: memref<1x8x32xf32, #tpu.memory_space<vmem>>, %arg6: memref<1x1x32xf32, #tpu.memory_space<vmem>>, %arg7: memref<1x8x32xf32, #tpu.memory_space<vmem>>) attributes {dimension_semantics = [#tpu.dimension_semantics<parallel>, #tpu.dimension_semantics<parallel>], iteration_bounds = array<i64: 2, 2>, scalar_prefetch = 0 : i64, scratch_operands = 0 : i64, tpu.core_type = #tpu.core_type<tc>, window_params = [{transform_indices = @transform_0, window_bounds = array<i64: 1, 8, 32>}, {pipeline_mode = #tpu.pipeline_mode<synchronous>, transform_indices = @transform_1, window_bounds = array<i64: 8, 32>}, {pipeline_mode = #tpu.pipeline_mode<synchronous>, transform_indices = @transform_2, window_bounds = array<i64: 1, 8>}, {transform_indices = @transform_3, window_bounds = array<i64: 1, 8, 32>}, {transform_indices = @transform_4, window_bounds = array<i64: 1, 1, 32>}, {transform_indices = @transform_5, window_bounds = array<i64: 1, 8, 32>}]} {
    %c0 = arith.constant 0 : index
    %c0_0 = arith.constant 0 : index
    %c0_1 = arith.constant 0 : index
    %0 = vector.load %arg2[%c0, %c0_0, %c0_1] : memref<1x8x32xf32, #tpu.memory_space<vmem>>, vector<1x8x32xf32>
    %1 = vector.shape_cast %0 : vector<1x8x32xf32> to vector<8x32xf32>
    %c0_2 = arith.constant 0 : index
    %c0_3 = arith.constant 0 : index
    %2 = vector.load %arg3[%c0_2, %c0_3] : memref<8x32xf32, #tpu.memory_space<vmem>>, vector<8x32xf32>
    %cst = arith.constant dense<0.000000e+00> : vector<8x8xf32>
    %3 = tpu.matmul %1, %2, %cst {dimension_numbers = #tpu.dot_dimension_numbers<[1], [1], [0], [0], [0, 0, 1, 0], [], []>} : vector<8x32xf32>, vector<8x32xf32>, vector<8x8xf32> -> vector<8x8xf32>
    %c0_4 = arith.constant 0 : index
    %c0_5 = arith.constant 0 : index
    %4 = vector.load %arg4[%c0_4, %c0_5] : memref<1x8xf32, #tpu.memory_space<vmem>>, vector<1x8xf32>
    %5 = vector.broadcast %4 : vector<1x8xf32> to vector<8x8xf32>
    %6 = arith.addf %3, %5 : vector<8x8xf32>
    %c0_6 = arith.constant 0 : index
    %c0_7 = arith.constant 0 : index
    %c0_8 = arith.constant 0 : index
    %7 = vector.load %arg5[%c0_6, %c0_7, %c0_8] : memref<1x8x32xf32, #tpu.memory_space<vmem>>, vector<1x8x32xf32>
    %8 = vector.shape_cast %7 : vector<1x8x32xf32> to vector<8x32xf32>
    %cst_9 = arith.constant dense<0.000000e+00> : vector<8x32xf32>
    %9 = tpu.matmul %6, %8, %cst_9 {dimension_numbers = #tpu.dot_dimension_numbers<[1], [0], [0], [1], [0, 0, 1, 1], [], []>} : vector<8x8xf32>, vector<8x32xf32>, vector<8x32xf32> -> vector<8x32xf32>
    %c0_10 = arith.constant 0 : index
    %c0_11 = arith.constant 0 : index
    %c0_12 = arith.constant 0 : index
    %10 = vector.load %arg6[%c0_10, %c0_11, %c0_12] : memref<1x1x32xf32, #tpu.memory_space<vmem>>, vector<1x1x32xf32>
    %11 = vector.shape_cast %10 : vector<1x1x32xf32> to vector<1x32xf32>
    %12 = vector.broadcast %11 : vector<1x32xf32> to vector<8x32xf32>
    %13 = arith.addf %9, %12 : vector<8x32xf32>
    %14 = arith.addf %13, %1 : vector<8x32xf32>
    %c0_13 = arith.constant 0 : index
    %c0_14 = arith.constant 0 : index
    %c0_15 = arith.constant 0 : index
    %15 = vector.load %arg7[%c0_13, %c0_14, %c0_15] : memref<1x8x32xf32, #tpu.memory_space<vmem>>, vector<1x8x32xf32>
    %16 = vector.shape_cast %15 : vector<1x8x32xf32> to vector<8x32xf32>
    %17 = vector.shape_cast %14 : vector<8x32xf32> to vector<1x8x32xf32>
    tpu.vector_store %arg7[%c0_13, %c0_14, %c0_15], %17 {strides = array<i32>} : memref<1x8x32xf32, #tpu.memory_space<vmem>>, vector<1x8x32xf32>,
    return
  }
  func.func @transform_0(%arg0: i32, %arg1: i32) -> (i32, i32, i32) {
    %c0_i32 = arith.constant 0 : i32
    %c0_i32_0 = arith.constant 0 : i32
    return %arg0, %arg1, %c0_i32 : i32, i32, i32
  }
  func.func @transform_1(%arg0: i32, %arg1: i32) -> (i32, i32) {
    %c0_i32 = arith.constant 0 : i32
    %c0_i32_0 = arith.constant 0 : i32
    %c0_i32_1 = arith.constant 0 : i32
    return %c0_i32, %c0_i32_0 : i32, i32
  }
  func.func @transform_2(%arg0: i32, %arg1: i32) -> (i32, i32) {
    %c0_i32 = arith.constant 0 : i32
    %c0_i32_0 = arith.constant 0 : i32
    %c0_i32_1 = arith.constant 0 : i32
    return %c0_i32, %c0_i32_0 : i32, i32
  }
  func.func @transform_3(%arg0: i32, %arg1: i32) -> (i32, i32, i32) {
    %c0_i32 = arith.constant 0 : i32
    %c0_i32_0 = arith.constant 0 : i32
    %c0_i32_1 = arith.constant 0 : i32
    return %arg0, %c0_i32, %c0_i32_0 : i32, i32, i32
  }
  func.func @transform_4(%arg0: i32, %arg1: i32) -> (i32, i32, i32) {
    %c0_i32 = arith.constant 0 : i32
    %c0_i32_0 = arith.constant 0 : i32
    %c0_i32_1 = arith.constant 0 : i32
    return %arg0, %c0_i32, %c0_i32_0 : i32, i32, i32
  }
  func.func @transform_5(%arg0: i32, %arg1: i32) -> (i32, i32, i32) {
    %c0_i32 = arith.constant 0 : i32
    %c0_i32_0 = arith.constant 0 : i32
    return %arg0, %arg1, %c0_i32 : i32, i32, i32
  }
}

</mosaic_0001>

<llo_original>
// kernel: tpu_custom_call.1
$region0: #{tpu_custom_call.1}
  #allocation0 [shape = 'u32[]', space=smem, size = 0x4, offset = 0x4, fixed_abs, tag = 'smem constant byte address 0x4 - core index']
  #allocation1 [shape = 'u32[144,128]{1,0:T(1,128)}', space=vmem, size = 0x12000, scoped, tag = 'internal scratch']
  %s0 = inlined_call_operand.hbm [shape: f32[2,16,32], index: 0, kind: input, shape index: {}]
  %s1 = inlined_call_operand.hbm [shape: f32[8,32], index: 1, kind: input, shape index: {}]
  %s2 = inlined_call_operand.vmem [shape: f32[1,8], index: 2, kind: input, shape index: {}]
  %s3 = inlined_call_operand.hbm [shape: f32[2,8,32], index: 3, kind: input, shape index: {}]
  %s4 = inlined_call_operand.vmem [shape: f32[2,1,32], index: 4, kind: input, shape index: {}]
  %s5 = inlined_call_operand.hbm [shape: f32[2,16,32], index: 5, kind: output, shape index: {}]
  %s6 = sld [smem:[#allocation0]]
  $region65: #{tpu_custom_call.1} parent=0
    _
  %s8 = ssub.s32 1, %s6
  %s9 = scalar_select 0, %s8, %s6
  $region1: #{tpu_custom_call.1} parent=0
    #allocation2 [shape = 'u8[8192]{0}', space=vmem, size = 0x2000, scoped, tag = 'input window, operand 0']
    #allocation3 [shape = 's32[2]{0}', space=sflag, size = 0x8, scoped, tag = 'scoped memory for tpu_custom_call.1']
    #allocation4 [shape = 's32[2]{0}', space=sflag, size = 0x8, scoped, tag = 'scoped memory for tpu_custom_call.1']
    #allocation5 [shape = 'u8[4096]{0}', space=vmem, size = 0x1000, scoped, tag = 'input window, operand 1, single buffered']
    #allocation6 [shape = 's32[1]{0}', space=sflag, size = 0x4, scoped, tag = 'scoped memory for tpu_custom_call.1']
    #allocation7 [shape = 'u8[8192]{0}', space=vmem, size = 0x2000, scoped, tag = 'input window, operand 3']
    #allocation8 [shape = 'u8[8192]{0}', space=vmem, size = 0x2000, scoped, tag = 'output window, operand 0']
    %10 = vsyncpa [#allocation3], 0
    %s11 = scalar_lea.sflag [#allocation3], 1
    %12 = vsyncpa %s11, 0
    %13 = vsyncpa [#allocation6], 0
    %14 = vsyncpa [#allocation4], 0
    %s15 = scalar_lea.sflag [#allocation4], 1
    %16 = vsyncpa %s15, 0
    loop: start=0, step=1, limit=6
    $region2: #{tpu_custom_call.1} parent=1 // loop_pre_header
      _
    $region3: #{tpu_custom_call.1} parent=1 // loop_header
      %s18 = sphi 0, %s22
      %p19 = scmp.ge.s32.totalorder %s18, 6
      %s25 = sphi 0, %s37
      %s26 = sphi 0, %s33
      %s27 = sphi 0, %s25
      %s28 = sphi 0, %s26
      %s29 = sphi 0, %s27
      %s30 = sphi 0, %s28
      %s42 = sphi 0, %s44
      %s45 = sphi 0, %s42
      %s46 = sphi 0, %s45
      %s62 = sphi 0, %s46
      %s66 = sphi 0, %s66
      %s68 = sphi 0, %s66
      %s69 = sphi 0, %s68
      %s83 = sphi 0, %s69
      %s87 = sphi 0, %s87
      %s89 = sphi 0, %s87
      %s90 = sphi 0, %s89
      %s104 = sphi 0, %s90
      %s110 = sphi 0, %s112
      %s113 = sphi 0, %s110
      %s114 = sphi 0, %s113
      %s130 = sphi 0, %s114
      %s136 = sphi 0, %s138
      %s139 = sphi 0, %s136
      %s140 = sphi 0, %s139
      %s156 = sphi 0, %s140
      %s164 = sphi 0, %s166
      %s167 = sphi 0, %s164
      %s168 = sphi 0, %s167
      %s184 = sphi 0, %s168
    $region4: #{tpu_custom_call.1} parent=1 // loop_header_branch
      %21 = sbr.rel (%p19) target = $region8
    $region5: #{tpu_custom_call.1} parent=1 // loop_body
      %s23 = ssub.s32 %s18, 1
      %s24 = ssub.s32 %s18, 2
      %s31 = sadd.s32 1, %s26
      %p32 = scmp.ge.s32.totalorder %s31, 2
      %s33 = scalar_select %p32, 0, %s31
      %s34 = sadd.s32 1, %s25
      %s35 = scalar_select %p32, %s34, %s25
      %p36 = scmp.ge.s32.totalorder %s35, 2
      %s37 = scalar_select %p36, 0, %s35
      %s38 = ssub.s32 %s25, %s37
      %s39 = ssub.s32 %s26, %s33
      %s40 = sor.u32 %s38, %s39
      %p41 = scmp.eq.s32.totalorder %s40, 0
      %s43 = sadd.s32 %s42, 1
      %s44 = scalar_select %p41, %s42, %s43
      %p47 = pneg %p41
      %p48 = scmp.eq.s32.totalorder %s18, 3
      %p49 = por %p47, %p48
      %p50 = scmp.ne.s32.totalorder %s42, %s45
      %p51 = scmp.eq.s32.totalorder %s18, 0
      %p52 = por %p50, %p51
      %p53 = scmp.ne.s32.totalorder %s42, %s45
      %p54 = scmp.eq.s32.totalorder %s23, 3
      %p55 = por %p53, %p54
      %p56 = scmp.ne.s32.totalorder %s45, %s46
      %p57 = scmp.eq.s32.totalorder %s23, 0
      %p58 = por %p56, %p57
      %p59 = scmp.ne.s32.totalorder %s45, %s46
      %p60 = scmp.eq.s32.totalorder %s24, 3
      %p61 = por %p59, %p60
      %p63 = scmp.ne.s32.totalorder %s46, %s62
      %p64 = scmp.eq.s32.totalorder %s24, 0
      %p65 = por %p63, %p64
      %s67 = sadd.s32 %s66, 1
      %p70 = scmp.eq.s32.totalorder %s18, 3
      %p71 = scmp.ne.s32.totalorder %s66, %s68
      %p72 = scmp.eq.s32.totalorder %s18, 0
      %p73 = por %p71, %p72
      %p74 = scmp.ne.s32.totalorder %s66, %s68
      %p75 = scmp.eq.s32.totalorder %s23, 3
      %p76 = por %p74, %p75
      %p77 = scmp.ne.s32.totalorder %s68, %s69
      %p78 = scmp.eq.s32.totalorder %s23, 0
      %p79 = por %p77, %p78
      %p80 = scmp.ne.s32.totalorder %s68, %s69
      %p81 = scmp.eq.s32.totalorder %s24, 3
      %p82 = por %p80, %p81
      %p84 = scmp.ne.s32.totalorder %s69, %s83
      %p85 = scmp.eq.s32.totalorder %s24, 0
      %p86 = por %p84, %p85
      %s88 = sadd.s32 %s87, 1
      %p91 = scmp.eq.s32.totalorder %s18, 3
      %p92 = scmp.ne.s32.totalorder %s87, %s89
      %p93 = scmp.eq.s32.totalorder %s18, 0
      %p94 = por %p92, %p93
      %p95 = scmp.ne.s32.totalorder %s87, %s89
      %p96 = scmp.eq.s32.totalorder %s23, 3
      %p97 = por %p95, %p96
      %p98 = scmp.ne.s32.totalorder %s89, %s90
      %p99 = scmp.eq.s32.totalorder %s23, 0
      %p100 = por %p98, %p99
      %p101 = scmp.ne.s32.totalorder %s89, %s90
      %p102 = scmp.eq.s32.totalorder %s24, 3
      %p103 = por %p101, %p102
      %p105 = scmp.ne.s32.totalorder %s90, %s104
      %p106 = scmp.eq.s32.totalorder %s24, 0
      %p107 = por %p105, %p106
      %s108 = ssub.s32 %s25, %s37
      %p109 = scmp.eq.s32.totalorder %s108, 0
      %s111 = sadd.s32 %s110, 1
      %s112 = scalar_select %p109, %s110, %s111
      %p115 = pneg %p109
      %p116 = scmp.eq.s32.totalorder %s18, 3
      %p117 = por %p115, %p116
      %p118 = scmp.ne.s32.totalorder %s110, %s113
      %p119 = scmp.eq.s32.totalorder %s18, 0
      %p120 = por %p118, %p119
      %p121 = scmp.ne.s32.totalorder %s110, %s113
      %p122 = scmp.eq.s32.totalorder %s23, 3
      %p123 = por %p121, %p122
      %p124 = scmp.ne.s32.totalorder %s113, %s114
      %p125 = scmp.eq.s32.totalorder %s23, 0
      %p126 = por %p124, %p125
      %p127 = scmp.ne.s32.totalorder %s113, %s114
      %p128 = scmp.eq.s32.totalorder %s24, 3
      %p129 = por %p127, %p128
      %p131 = scmp.ne.s32.totalorder %s114, %s130
      %p132 = scmp.eq.s32.totalorder %s24, 0
      %p133 = por %p131, %p132
      %s134 = ssub.s32 %s25, %s37
      %p135 = scmp.eq.s32.totalorder %s134, 0
      %s137 = sadd.s32 %s136, 1
      %s138 = scalar_select %p135, %s136, %s137
      %p141 = pneg %p135
      %p142 = scmp.eq.s32.totalorder %s18, 3
      %p143 = por %p141, %p142
      %p144 = scmp.ne.s32.totalorder %s136, %s139
      %p145 = scmp.eq.s32.totalorder %s18, 0
      %p146 = por %p144, %p145
      %p147 = scmp.ne.s32.totalorder %s136, %s139
      %p148 = scmp.eq.s32.totalorder %s23, 3
      %p149 = por %p147, %p148
      %p150 = scmp.ne.s32.totalorder %s139, %s140
      %p151 = scmp.eq.s32.totalorder %s23, 0
      %p152 = por %p150, %p151
      %p153 = scmp.ne.s32.totalorder %s139, %s140
      %p154 = scmp.eq.s32.totalorder %s24, 3
      %p155 = por %p153, %p154
      %p157 = scmp.ne.s32.totalorder %s140, %s156
      %p158 = scmp.eq.s32.totalorder %s24, 0
      %p159 = por %p157, %p158
      %s160 = ssub.s32 %s25, %s37
      %s161 = ssub.s32 %s26, %s33
      %s162 = sor.u32 %s160, %s161
      %p163 = scmp.eq.s32.totalorder %s162, 0
      %s165 = sadd.s32 %s164, 1
      %s166 = scalar_select %p163, %s164, %s165
      %p169 = pneg %p163
      %p170 = scmp.eq.s32.totalorder %s18, 3
      %p171 = por %p169, %p170
      %p172 = scmp.ne.s32.totalorder %s164, %s167
      %p173 = scmp.eq.s32.totalorder %s18, 0
      %p174 = por %p172, %p173
      %p175 = scmp.ne.s32.totalorder %s164, %s167
      %p176 = scmp.eq.s32.totalorder %s23, 3
      %p177 = por %p175, %p176
      %p178 = scmp.ne.s32.totalorder %s167, %s168
      %p179 = scmp.eq.s32.totalorder %s23, 0
      %p180 = por %p178, %p179
      %p181 = scmp.ne.s32.totalorder %s167, %s168
      %p182 = scmp.eq.s32.totalorder %s24, 3
      %p183 = por %p181, %p182
      %p185 = scmp.ne.s32.totalorder %s168, %s184
      %p186 = scmp.eq.s32.totalorder %s24, 0
      %p187 = por %p185, %p186
      %p188 = scmp.le.s32.totalorder 1, %s18
      %p189 = scmp.lt.s32.totalorder %s18, 5
      %p190 = pnand %p188, %p189
      %p191 = pneg %p190
      // Predicated region
      $region9: #{tpu_custom_call.1} parent=5 // pred_check
        _
      $region10: #{tpu_custom_call.1} parent=5 // pred_check_branch
        %193 = sbr.rel (%p190) target = $region12
      $region11: #{tpu_custom_call.1} parent=5 // pred_region
        %s194 = ssub.s32 %s18, 1
        // Predicated region
        $region13: #{tpu_custom_call.1} parent=11 // pred_check
          %p195 = pneg %p79
        $region14: #{tpu_custom_call.1} parent=11 // pred_check_branch
          %197 = sbr.rel (%p195) target = $region16
        $region15: #{tpu_custom_call.1} parent=11 // pred_region
          %s199 = ssub.s32 128, 128
          %200 = vsyncadd [#allocation6], %s199
          %s202 = sshll.u32 [#allocation5], 4
          %s203 = int_to_ptr.vmem [resolvable:$true] %s202
          %205 = dma.hbm_to_vmem [thread:$0]  %s1, 128, %s203, [#allocation6]
        $region16: #{tpu_custom_call.1} parent=11 // pred_fallthru
          _
        // Predicated region
        $region17: #{tpu_custom_call.1} parent=11 // pred_check
          %p206 = pneg %p100
        $region18: #{tpu_custom_call.1} parent=11 // pred_check_branch
          %208 = sbr.rel (%p206) target = $region20
        $region19: #{tpu_custom_call.1} parent=11 // pred_region
          _
        $region20: #{tpu_custom_call.1} parent=11 // pred_fallthru
          _
      $region12: #{tpu_custom_call.1} parent=5 // pred_fallthru
        _
      %p209 = scmp.lt.s32.totalorder %s18, 4
      // Predicated region
      $region21: #{tpu_custom_call.1} parent=5 // pred_check
        %p210 = pneg %p209
      $region22: #{tpu_custom_call.1} parent=5 // pred_check_branch
        %212 = sbr.rel (%p210) target = $region24
      $region23: #{tpu_custom_call.1} parent=5 // pred_region
        // Predicated region
        $region25: #{tpu_custom_call.1} parent=23 // pred_check
          %p213 = pneg %p52
        $region26: #{tpu_custom_call.1} parent=23 // pred_check_branch
          %215 = sbr.rel (%p213) target = $region28
        $region27: #{tpu_custom_call.1} parent=23 // pred_region
          %s216 = sand.u32 %s18, 1
          %s217 = scalar_lea.sflag [#allocation3], %s216
          %s218 = sand.u32 %s42, 1
          %s219 = smul.addr %s218, 8
          %s220 = scalar_lea.vmem [#allocation2], %s219
          %s222 = ssub.s32 128, 128
          %223 = vsyncadd %s217, %s222
          %s224 = smul.addr %s25, 2
          %s225 = sadd.s32 %s26, %s224
          %s226 = smul.addr %s225, 128
          %s227 = scalar_lea.hbm %s0, %s226
          %s229 = sshll.u32 %s220, 4
          %s230 = int_to_ptr.vmem [resolvable:$true] %s229
          %232 = dma.hbm_to_vmem [thread:$0]  %s227, 128, %s230, %s217
        $region28: #{tpu_custom_call.1} parent=23 // pred_fallthru
          _
        // Predicated region
        $region29: #{tpu_custom_call.1} parent=23 // pred_check
          %p233 = pneg %p120
        $region30: #{tpu_custom_call.1} parent=23 // pred_check_branch
          %235 = sbr.rel (%p233) target = $region32
        $region31: #{tpu_custom_call.1} parent=23 // pred_region
          %s236 = sand.u32 %s18, 1
          %s237 = scalar_lea.sflag [#allocation3], %s236
          %s238 = sand.u32 %s110, 1
          %s239 = smul.addr %s238, 8
          %s240 = scalar_lea.vmem [#allocation7], %s239
          %s242 = ssub.s32 128, 128
          %243 = vsyncadd %s237, %s242
          %s244 = smul.addr %s25, 128
          %s245 = scalar_lea.hbm %s3, %s244
          %s247 = sshll.u32 %s240, 4
          %s248 = int_to_ptr.vmem [resolvable:$true] %s247
          %250 = dma.hbm_to_vmem [thread:$0]  %s245, 128, %s248, %s237
        $region32: #{tpu_custom_call.1} parent=23 // pred_fallthru
          _
        // Predicated region
        $region33: #{tpu_custom_call.1} parent=23 // pred_check
          %p251 = pneg %p146
        $region34: #{tpu_custom_call.1} parent=23 // pred_check_branch
          %253 = sbr.rel (%p251) target = $region36
        $region35: #{tpu_custom_call.1} parent=23 // pred_region
          %p254 = scmp.lt.s32.totalorder %s25, 1
          %s255 = scalar_select %p254, %s25, 1
          %s256 = scalar_lea.vmem %s4, %s255
        $region36: #{tpu_custom_call.1} parent=23 // pred_fallthru
          _
      $region24: #{tpu_custom_call.1} parent=5 // pred_fallthru
        _
      %p257 = scmp.le.s32.totalorder 1, %s18
      %p258 = scmp.lt.s32.totalorder %s18, 5
      %p259 = pnand %p257, %p258
      %p260 = pneg %p259
      // Predicated region
      $region37: #{tpu_custom_call.1} parent=5 // pred_check
        _
      $region38: #{tpu_custom_call.1} parent=5 // pred_check_branch
        %262 = sbr.rel (%p259) target = $region40
      $region39: #{tpu_custom_call.1} parent=5 // pred_region
        %s263 = ssub.s32 %s18, 1
        %s264 = sand.u32 %s23, 1
        %s265 = scalar_lea.sflag [#allocation3], %s264
        %s266 = sand.u32 %s45, 1
        %s267 = smul.addr %s266, 8
        %s268 = scalar_lea.vmem [#allocation2], %s267
        // Predicated region
        $region41: #{tpu_custom_call.1} parent=39 // pred_check
          %p269 = pneg %p58
        $region42: #{tpu_custom_call.1} parent=39 // pred_check_branch
          %271 = sbr.rel (%p269) target = $region44
        $region43: #{tpu_custom_call.1} parent=39 // pred_region
          %272 = dma.done %s265, 128
        $region44: #{tpu_custom_call.1} parent=39 // pred_fallthru
          _
        // Predicated region
        $region45: #{tpu_custom_call.1} parent=39 // pred_check
          %p273 = pneg %p79
        $region46: #{tpu_custom_call.1} parent=39 // pred_check_branch
          %275 = sbr.rel (%p273) target = $region48
        $region47: #{tpu_custom_call.1} parent=39 // pred_region
          %276 = dma.done [#allocation6], 128
        $region48: #{tpu_custom_call.1} parent=39 // pred_fallthru
          _
        %s277 = sand.u32 %s23, 1
        %s278 = scalar_lea.sflag [#allocation3], %s277
        %s279 = sand.u32 %s113, 1
        %s280 = smul.addr %s279, 8
        %s281 = scalar_lea.vmem [#allocation7], %s280
        // Predicated region
        $region49: #{tpu_custom_call.1} parent=39 // pred_check
          %p282 = pneg %p126
        $region50: #{tpu_custom_call.1} parent=39 // pred_check_branch
          %284 = sbr.rel (%p282) target = $region52
        $region51: #{tpu_custom_call.1} parent=39 // pred_region
          %285 = dma.done %s278, 128
        $region52: #{tpu_custom_call.1} parent=39 // pred_fallthru
          _
        %s286 = sand.u32 %s23, 1
        %s287 = scalar_lea.sflag [#allocation3], %s286
        %s288 = sand.u32 %s45, 1
        %s289 = smul.addr %s288, 8
        %s290 = scalar_lea.vmem [#allocation2], %s289
        %p291 = pneg %p58
        %p292 = pneg %p55
        %p293 = pneg %p79
        %p294 = pneg %p76
        %p295 = pneg %p100
        %p296 = pneg %p97
        %s297 = sand.u32 %s23, 1
        %s298 = scalar_lea.sflag [#allocation3], %s297
        %s299 = sand.u32 %s113, 1
        %s300 = smul.addr %s299, 8
        %s301 = scalar_lea.vmem [#allocation7], %s300
        %p302 = pneg %p126
        %p303 = pneg %p123
        %p304 = scmp.lt.s32.totalorder %s27, 1
        %s305 = scalar_select %p304, %s27, 1
        %s306 = scalar_lea.vmem %s4, %s305
        %p307 = pneg %p152
        %p308 = pneg %p149
        %p309 = pneg %p180
        %p310 = pneg %p177
        %s311 = sand.u32 %s167, 1
        %s312 = scalar_lea.sflag [#allocation4], %s311
        %s313 = sand.u32 %s167, 1
        %s314 = smul.addr %s313, 8
        %s315 = scalar_lea.vmem [#allocation8], %s314
        %p316 = scmp.lt.s32.totalorder %s27, 1
        %s317 = scalar_select %p316, %s27, 1
        %s318 = scalar_lea.vmem %s4, %s317
        %v319 = vld [vmem:[%s268] sm:$0xff]
        %v320 = vld [vmem:[#allocation5] sm:$0xff]
        %v321 = vld [vmem:[%s2] sm:$0x1]
        %v323 = vlaneseq
        %v324 = vshrl.u32 %v323, 7
        %v325 = vsub.s32 0, %v324
        %v326 = vrot.slane %v321, %v325
        %vm328 = vcmask 261120
        %v330 = vsel %vm328, %v319, 0
        %v333 = vsel %vm328, %v320, 0
        %335 = vmatprep.subr.mxu0 0.0
        %336 = vmatpush1.xpose.msra.mxu0 %v333
        %337 = vmatprep.subr.mxu0 0.0
        %338 = vmatpush1.xpose.msra.mxu0 0.0
        %339 = vmatprep.subr.mxu0 0.0
        %340 = vmatpush1.xpose.msra.mxu0 0.0
        %341 = vmatprep.subr.mxu0 0.0
        %342 = vmatpush1.xpose.msra.mxu0 0.0
        %343 = vmatprep.subr.mxu0 0.0
        %344 = vmatpush1.xpose.msra.mxu0 0.0
        %345 = vmatprep.subr.mxu0 0.0
        %346 = vmatpush1.xpose.msra.mxu0 0.0
        %347 = vmatprep.subr.mxu0 0.0
        %348 = vmatpush1.xpose.msra.mxu0 0.0
        %349 = vmatprep.subr.mxu0 0.0
        %350 = vmatpush1.xpose.msra.mxu0 0.0
        %351 = vmatprep.subr.mxu0 0.0
        %352 = vmatpush1.xpose.msra.mxu0 0.0
        %353 = vmatprep.subr.mxu0 0.0
        %354 = vmatpush1.xpose.msra.mxu0 0.0
        %355 = vmatprep.subr.mxu0 0.0
        %356 = vmatpush1.xpose.msra.mxu0 0.0
        %357 = vmatprep.subr.mxu0 0.0
        %358 = vmatpush1.xpose.msra.mxu0 0.0
        %359 = vmatprep.subr.mxu0 0.0
        %360 = vmatpush1.xpose.msra.mxu0 0.0
        %361 = vmatprep.subr.mxu0 0.0
        %362 = vmatpush1.xpose.msra.mxu0 0.0
        %363 = vmatprep.subr.mxu0 0.0
        %364 = vmatpush1.xpose.msra.mxu0 0.0
        %365 = vmatprep.subr.mxu0 0.0
        %366 = vmatpush1.xpose.msra.mxu0 0.0
        %367 = vmatprep.subr.mxu0 0.0
        %368 = vmatpush1.xpose.msra.mxu0 0.0
        %369 = vmatprep.subr.mxu0 0.0
        %370 = vmatpush1.xpose.msra.mxu0 0.0
        %371 = vmatprep.subr.mxu0 0.0
        %372 = vmatpush1.xpose.msra.mxu0 0.0
        %373 = vmatprep.subr.mxu0 0.0
        %374 = vmatpush1.xpose.msra.mxu0 0.0
        %375 = vmatprep.subr.mxu0 0.0
        %376 = vmatpush1.xpose.msra.mxu0 0.0
        %377 = vmatprep.subr.mxu0 0.0
        %378 = vmatpush1.xpose.msra.mxu0 0.0
        %379 = vmatprep.subr.mxu0 0.0
        %380 = vmatpush1.xpose.msra.mxu0 0.0
        %381 = vmatprep.subr.mxu0 0.0
        %382 = vmatpush1.xpose.msra.mxu0 0.0
        %383 = vmatprep.subr.mxu0 0.0
        %384 = vmatpush1.xpose.msra.mxu0 0.0
        %385 = vmatprep.subr.mxu0 0.0
        %386 = vmatpush1.xpose.msra.mxu0 0.0
        %387 = vmatprep.subr.mxu0 0.0
        %388 = vmatpush1.xpose.msra.mxu0 0.0
        %389 = vmatprep.subr.mxu0 0.0
        %390 = vmatpush1.xpose.msra.mxu0 0.0
        %391 = vmatprep.subr.mxu0 0.0
        %392 = vmatpush1.xpose.msra.mxu0 0.0
        %393 = vmatprep.subr.mxu0 0.0
        %394 = vmatpush1.xpose.msra.mxu0 0.0
        %395 = vmatprep.subr.mxu0 0.0
        %396 = vmatpush1.xpose.msra.mxu0 0.0
        %397 = vmatprep.subr.mxu0 0.0
        %398 = vmatpush1.xpose.msra.mxu0 0.0
        %399 = vmatprep.mubr.f32.mxu0 0.0
        %400 = vmatmul.mubr.f32.gmra.mrb[0].mxu0 %v330
        %v401 = vpop.f32.mrb[0].mxu0
        %v402 = vadd.f32 %v326, %v401
        %v403 = vpop.f32.mrb[0].mxu0
        %404 = vdwg.mxu0
        %v405 = vld [vmem:[%s281] sm:$0xff]
        %v406 = vld [vmem:[%s318] sm:$0x1]
        %v408 = vlaneseq
        %v409 = vshrl.u32 %v408, 7
        %v410 = vsub.s32 0, %v409
        %v411 = vrot.slane %v406, %v410
        %vm413 = vcmask 64512
        %v415 = vsel %vm413, %v402, 0
        %417 = vmatprep.subr.mxu0 0.0
        %418 = vmatpush1.msra.mxu0 %v405
        %419 = vmatprep.subr.mxu0 0.0
        %420 = vmatpush1.msra.mxu0 0.0
        %421 = vmatprep.subr.mxu0 0.0
        %422 = vmatpush1.msra.mxu0 0.0
        %423 = vmatprep.subr.mxu0 0.0
        %424 = vmatpush1.msra.mxu0 0.0
        %425 = vmatprep.subr.mxu0 0.0
        %426 = vmatpush1.msra.mxu0 0.0
        %427 = vmatprep.subr.mxu0 0.0
        %428 = vmatpush1.msra.mxu0 0.0
        %429 = vmatprep.subr.mxu0 0.0
        %430 = vmatpush1.msra.mxu0 0.0
        %431 = vmatprep.subr.mxu0 0.0
        %432 = vmatpush1.msra.mxu0 0.0
        %433 = vmatprep.subr.mxu0 0.0
        %434 = vmatpush1.msra.mxu0 0.0
        %435 = vmatprep.subr.mxu0 0.0
        %436 = vmatpush1.msra.mxu0 0.0
        %437 = vmatprep.subr.mxu0 0.0
        %438 = vmatpush1.msra.mxu0 0.0
        %439 = vmatprep.subr.mxu0 0.0
        %440 = vmatpush1.msra.mxu0 0.0
        %441 = vmatprep.subr.mxu0 0.0
        %442 = vmatpush1.msra.mxu0 0.0
        %443 = vmatprep.subr.mxu0 0.0
        %444 = vmatpush1.msra.mxu0 0.0
        %445 = vmatprep.subr.mxu0 0.0
        %446 = vmatpush1.msra.mxu0 0.0
        %447 = vmatprep.subr.mxu0 0.0
        %448 = vmatpush1.msra.mxu0 0.0
        %449 = vmatprep.subr.mxu0 0.0
        %450 = vmatpush1.msra.mxu0 0.0
        %451 = vmatprep.subr.mxu0 0.0
        %452 = vmatpush1.msra.mxu0 0.0
        %453 = vmatprep.subr.mxu0 0.0
        %454 = vmatpush1.msra.mxu0 0.0
        %455 = vmatprep.subr.mxu0 0.0
        %456 = vmatpush1.msra.mxu0 0.0
        %457 = vmatprep.subr.mxu0 0.0
        %458 = vmatpush1.msra.mxu0 0.0
        %459 = vmatprep.subr.mxu0 0.0
        %460 = vmatpush1.msra.mxu0 0.0
        %461 = vmatprep.subr.mxu0 0.0
        %462 = vmatpush1.msra.mxu0 0.0
        %463 = vmatprep.subr.mxu0 0.0
        %464 = vmatpush1.msra.mxu0 0.0
        %465 = vmatprep.subr.mxu0 0.0
        %466 = vmatpush1.msra.mxu0 0.0
        %467 = vmatprep.subr.mxu0 0.0
        %468 = vmatpush1.msra.mxu0 0.0
        %469 = vmatprep.subr.mxu0 0.0
        %470 = vmatpush1.msra.mxu0 0.0
        %471 = vmatprep.subr.mxu0 0.0
        %472 = vmatpush1.msra.mxu0 0.0
        %473 = vmatprep.subr.mxu0 0.0
        %474 = vmatpush1.msra.mxu0 0.0
        %475 = vmatprep.subr.mxu0 0.0
        %476 = vmatpush1.msra.mxu0 0.0
        %477 = vmatprep.subr.mxu0 0.0
        %478 = vmatpush1.msra.mxu0 0.0
        %479 = vmatprep.subr.mxu0 0.0
        %480 = vmatpush1.msra.mxu0 0.0
        %481 = vmatprep.mubr.f32.mxu0 0.0
        %482 = vmatmul.mubr.f32.gmra.mrb[0].mxu0 %v415
        %v483 = vpop.f32.mrb[0].mxu0
        %v484 = vadd.f32 %v411, %v483
        %v485 = vpop.f32.mrb[0].mxu0
        %486 = vdwg.mxu0
        %v487 = vadd.f32 %v484, %v319
        %488 = vst.msk [vmem:[%s315] sm:$0xff] %vm328, %v487
        %s489 = sand.u32 %s167, 1
        %s490 = scalar_lea.sflag [#allocation4], %s489
        %s491 = sand.u32 %s167, 1
        %s492 = smul.addr %s491, 8
        %s493 = scalar_lea.vmem [#allocation8], %s492
        // Predicated region
        $region53: #{tpu_custom_call.1} parent=39 // pred_check
          %p494 = pneg %p177
        $region54: #{tpu_custom_call.1} parent=39 // pred_check_branch
          %496 = sbr.rel (%p494) target = $region56
        $region55: #{tpu_custom_call.1} parent=39 // pred_region
          %s498 = ssub.s32 128, 128
          %499 = vsyncadd %s490, %s498
          %s500 = smul.addr %s27, 2
          %s501 = sadd.s32 %s28, %s500
          %s502 = smul.addr %s501, 128
          %s503 = scalar_lea.hbm %s5, %s502
          %s505 = sshll.u32 %s493, 4
          %s506 = int_to_ptr.vmem [resolvable:$true] %s505
          %508 = dma.vmem_to_hbm [thread:$0]  %s506, 128, %s503, %s490
        $region56: #{tpu_custom_call.1} parent=39 // pred_fallthru
          _
      $region40: #{tpu_custom_call.1} parent=5 // pred_fallthru
        _
      %p509 = scmp.le.s32.totalorder 2, %s18
      // Predicated region
      $region57: #{tpu_custom_call.1} parent=5 // pred_check
        %p510 = pneg %p509
      $region58: #{tpu_custom_call.1} parent=5 // pred_check_branch
        %512 = sbr.rel (%p510) target = $region60
      $region59: #{tpu_custom_call.1} parent=5 // pred_region
        %s513 = ssub.s32 %s18, 2
        // Predicated region
        $region61: #{tpu_custom_call.1} parent=59 // pred_check
          %p514 = pneg %p183
        $region62: #{tpu_custom_call.1} parent=59 // pred_check_branch
          %516 = sbr.rel (%p514) target = $region64
        $region63: #{tpu_custom_call.1} parent=59 // pred_region
          %s517 = sand.u32 %s168, 1
          %s518 = scalar_lea.sflag [#allocation4], %s517
          %s519 = sand.u32 %s168, 1
          %s520 = smul.addr %s519, 8
          %s521 = scalar_lea.vmem [#allocation8], %s520
          %522 = dma.done %s518, 128
        $region64: #{tpu_custom_call.1} parent=59 // pred_fallthru
          _
      $region60: #{tpu_custom_call.1} parent=5 // pred_fallthru
        _
    $region6: #{tpu_custom_call.1} parent=1 // loop_footer
      %s22 = sadd.s32 1, %s18
    $region7: #{tpu_custom_call.1} parent=1 // loop_footer_branch
      %17 = sbr.rel target = $region3
    $region8: #{tpu_custom_call.1} parent=1 // loop_exit
      _
    %523 = vsyncpa [#allocation3], 1
    %s524 = scalar_lea.sflag [#allocation3], 1
    %525 = vsyncpa %s524, 1
    %526 = vsyncpa [#allocation6], 1
    %527 = vsyncpa [#allocation4], 1
    %s528 = scalar_lea.sflag [#allocation4], 1
    %529 = vsyncpa %s528, 1

</llo_original>
